<compile_context>
chip_gen: v6e
topology: v6e:2x2x1
jax: 0.10.0
libtpu: 0.0.40
codegen_flags: <defaults>
</compile_context>

<pallas_src>
import functools

import jax
import jax.numpy as jnp
from jax import lax
from jax.experimental import pallas as pl
from jax.experimental.pallas import tpu as pltpu


# Safe on all generations: <= v7x's 64 MiB physical VMEM. v5e/v6e (128 MiB) can raise.
_VMEM_LIMIT = 48 * 1024 * 1024


# ---------------------------------------------------------------------------
# helpers
# ---------------------------------------------------------------------------
def _pick_tile(n, pref):
    if n <= pref:
        return n
    assert n % pref == 0, f"dim {n} not divisible by tile {pref}"
    # TODO(synk): no padding/masking path for ragged seq lengths / vocab sizes.
    return pref


def _exact_softmax(x):
    m = jnp.max(x, axis=-1, keepdims=True)
    e = jnp.exp(x - m)
    return e / jnp.sum(e, axis=-1, keepdims=True)


# ---------------------------------------------------------------------------
# Kernel 0: context projection  cf = context @ Wc + bc   (emitted in bf16)
# ---------------------------------------------------------------------------
def _ctx_proj_kernel(c_ref, wc_ref, bc_ref, cf_ref):
    cf = (jnp.dot(c_ref[0].astype(jnp.bfloat16), wc_ref[...],
                  preferred_element_type=jnp.float32) + bc_ref[...])
    cf_ref[0] = cf.astype(jnp.bfloat16)


def context_projection(context, wc_bf16, bc, *, tc=None):
    B, Lc, D = context.shape
    tc = _pick_tile(Lc, 256 if tc is None else tc)
    return pl.pallas_call(
        _ctx_proj_kernel,
        out_shape=jax.ShapeDtypeStruct((B, Lc, D), jnp.bfloat16),
        grid=(B, Lc // tc),
        in_specs=[
            pl.BlockSpec((1, tc, D), lambda b, c: (b, c, 0)),
            pl.BlockSpec((D, D), lambda b, c: (0, 0)),
            pl.BlockSpec((1, D), lambda b, c: (0, 0)),
        ],
        out_specs=pl.BlockSpec((1, tc, D), lambda b, c: (b, c, 0)),
        compiler_params=pltpu.CompilerParams(
            dimension_semantics=("parallel", "parallel")),
    )(context, wc_bf16, bc)


# ---------------------------------------------------------------------------
# Kernel 1: answer projection + cross attention + residual combine (stateless,
#           both grid axes parallel).  combined is emitted in bf16.
# ---------------------------------------------------------------------------
def _attn_kernel(h_ref, cf_ref, wa_ref, ba_ref, attn_ref, comb_ref):
    h = h_ref[0]                                                   # (tq, D) f32
    cf = cf_ref[0]                                                 # (Lc, D) bf16
    af = (jnp.dot(h.astype(jnp.bfloat16), wa_ref[...],
                  preferred_element_type=jnp.float32) + ba_ref[...])
    # contract last dims of both operands -> no transpose/relayout of cf
    scores = lax.dot_general(af.astype(jnp.bfloat16), cf,
                             dimension_numbers=(((1,), (1,)), ((), ())),
                             preferred_element_type=jnp.float32)   # (tq, Lc)
    attn = _exact_softmax(scores)
    att_ctx = jnp.dot(attn.astype(jnp.bfloat16), cf,
                      preferred_element_type=jnp.float32)          # (tq, D)
    attn_ref[0] = attn
    comb_ref[0] = (h + att_ctx).astype(jnp.bfloat16)


def attention_combine(hidden, cf_bf16, wa_bf16, ba, *, tq=None):
    B, Ls, D = hidden.shape
    _, Lc, _ = cf_bf16.shape
    tq = _pick_tile(Ls, 256 if tq is None else tq)
    return pl.pallas_call(
        _attn_kernel,
        out_shape=(jax.ShapeDtypeStruct((B, Ls, Lc), jnp.float32),     # attention weights
                   jax.ShapeDtypeStruct((B, Ls, D), jnp.bfloat16)),    # combined features
        grid=(B, Ls // tq),
        in_specs=[
            pl.BlockSpec((1, tq, D), lambda b, q: (b, q, 0)),
            pl.BlockSpec((1, Lc, D), lambda b, q: (b, 0, 0)),          # resident over q
            pl.BlockSpec((D, D), lambda b, q: (0, 0)),
            pl.BlockSpec((1, D), lambda b, q: (0, 0)),
        ],
        out_specs=(
            pl.BlockSpec((1, tq, Lc), lambda b, q: (b, q, 0)),
            pl.BlockSpec((1, tq, D), lambda b, q: (b, q, 0)),
        ),
        compiler_params=pltpu.CompilerParams(
            dimension_semantics=("parallel", "parallel")),
        # TODO(synk): for very long Lc, tile Lc with a flash-style online softmax
        # instead of keeping the whole (Lc, D) bf16 context block resident.
    )(hidden, cf_bf16, wa_bf16, ba)


# ---------------------------------------------------------------------------
# Kernel 2: vocab projection (V innermost) + online log-sum-exp.
#   x block is resident across the V sweep (read once per row block);
#   lse is written only on the final V tile.
# ---------------------------------------------------------------------------
def _vocab_kernel(x_ref, wv_ref, bv_ref, logits_ref, lse_ref, m_scr, l_scr):
    v = pl.program_id(2)

    @pl.when(v == 0)
    def _():
        m_scr[...] = jnp.full_like(m_scr, -jnp.inf)
        l_scr[...] = jnp.zeros_like(l_scr)

    logit = (jnp.dot(x_ref[0], wv_ref[...],
                     preferred_element_type=jnp.float32) + bv_ref[...])   # (tq, tv)
    logits_ref[0] = logit

    m_prev = m_scr[...]
    m_new = jnp.maximum(m_prev, jnp.max(logit, axis=-1, keepdims=True))
    l_scr[...] = (l_scr[...] * jnp.exp(m_prev - m_new)
                  + jnp.sum(jnp.exp(logit - m_new), axis=-1, keepdims=True))
    m_scr[...] = m_new

    @pl.when(v == pl.num_programs(2) - 1)
    def _():
        lse_ref[0] = m_scr[...] + jnp.log(l_scr[...])


def vocab_logits_lse(x_bf16, wv_bf16, bv, *, tq=None, tv=None):
    B, Ls, D = x_bf16.shape
    V = wv_bf16.shape[1]
    tq = _pick_tile(Ls, 256 if tq is None else tq)
    tv = _pick_tile(V, 2048 if tv is None else tv)
    return pl.pallas_call(
        _vocab_kernel,
        out_shape=(jax.ShapeDtypeStruct((B, Ls, V), jnp.float32),    # logits
                   jax.ShapeDtypeStruct((B, Ls, 1), jnp.float32)),   # log-sum-exp per row
        grid=(B, Ls // tq, V // tv),
        in_specs=[
            pl.BlockSpec((1, tq, D), lambda b, q, v: (b, q, 0)),     # resident over v
            pl.BlockSpec((D, tv), lambda b, q, v: (0, v)),
            pl.BlockSpec((1, tv), lambda b, q, v: (0, v)),
        ],
        out_specs=(
            pl.BlockSpec((1, tq, tv), lambda b, q, v: (b, q, v)),
            pl.BlockSpec((1, tq, 1), lambda b, q, v: (b, q, 0)),     # resident over v
        ),
        scratch_shapes=[pltpu.VMEM((tq, 1), jnp.float32),            # running max
                        pltpu.VMEM((tq, 1), jnp.float32)],           # running sum-exp
        compiler_params=pltpu.CompilerParams(
            dimension_semantics=("parallel", "parallel", "arbitrary"),
            vmem_limit_bytes=_VMEM_LIMIT),
    )(x_bf16, wv_bf16, bv)


# ---------------------------------------------------------------------------
# Kernel 3: normalize pass — probs = exp(logits - lse), large lane-dense tiles.
# ---------------------------------------------------------------------------
def _vocab_probs_kernel(logits_ref, lse_ref, probs_ref):
    probs_ref[0] = jnp.exp(logits_ref[0] - lse_ref[0])


def vocab_probs(logits, lse, *, tq=None, tv=None):
    B, Ls, V = logits.shape
    tq = _pick_tile(Ls, 256 if tq is None else tq)
    tv = _pick_tile(V, 4096 if tv is None else tv)   # pure element-wise, HBM-bound
    return pl.pallas_call(
        _vocab_probs_kernel,
        out_shape=jax.ShapeDtypeStruct((B, Ls, V), jnp.float32),
        grid=(B, Ls // tq, V // tv),
        in_specs=[
            pl.BlockSpec((1, tq, tv), lambda b, q, v: (b, q, v)),
            pl.BlockSpec((1, tq, 1), lambda b, q, v: (b, q, 0)),
        ],
        out_specs=pl.BlockSpec((1, tq, tv), lambda b, q, v: (b, q, v)),
        compiler_params=pltpu.CompilerParams(
            dimension_semantics=("parallel", "parallel", "parallel"),
            vmem_limit_bytes=_VMEM_LIMIT),
    )(logits, lse)


# ---------------------------------------------------------------------------
# Kernel 4: fused mean-pool over seq + classification head.
# ---------------------------------------------------------------------------
def _pool_class_kernel(h_ref, wcl_ref, bcl_ref, clog_ref, cprob_ref, acc_ref, *, inv_len):
    q = pl.program_id(1)

    @pl.when(q == 0)
    def _():
        acc_ref[...] = jnp.zeros_like(acc_ref)

    acc_ref[...] += jnp.sum(h_ref[0], axis=0, keepdims=True)        # (1, D)

    @pl.when(q == pl.num_programs(1) - 1)
    def _():
        pooled = acc_ref[...] * inv_len                             # (1, D) f32
        logits = (jnp.dot(pooled.astype(jnp.bfloat16), wcl_ref[...],
                          preferred_element_type=jnp.float32) + bcl_ref[...])
        clog_ref[0] = logits
        cprob_ref[0] = _exact_softmax(logits)


def pooled_class_head(hidden, wcl_bf16, bcl, *, tq=None):
    B, Ls, D = hidden.shape
    C = wcl_bf16.shape[1]
    tq = _pick_tile(Ls, 256 if tq is None else tq)
    kernel = functools.partial(_pool_class_kernel, inv_len=1.0 / Ls)
    return pl.pallas_call(
        kernel,
        out_shape=(jax.ShapeDtypeStruct((B, 1, C), jnp.float32),
                   jax.ShapeDtypeStruct((B, 1, C), jnp.float32)),
        grid=(B, Ls // tq),
        in_specs=[
            pl.BlockSpec((1, tq, D), lambda b, q: (b, q, 0)),
            pl.BlockSpec((D, C), lambda b, q: (0, 0)),
            pl.BlockSpec((1, C), lambda b, q: (0, 0)),
        ],
        out_specs=(
            pl.BlockSpec((1, 1, C), lambda b, q: (b, 0, 0)),        # resident over q
            pl.BlockSpec((1, 1, C), lambda b, q: (b, 0, 0)),
        ),
        scratch_shapes=[pltpu.VMEM((1, D), jnp.float32)],
        compiler_params=pltpu.CompilerParams(
            dimension_semantics=("parallel", "arbitrary")),
    )(hidden, wcl_bf16, bcl)


# ---------------------------------------------------------------------------
# Module wrapper
# ---------------------------------------------------------------------------
def init_params(key, d_model, vocab_size, num_classes):
    ks = jax.random.split(key, 8)
    s = 1.0 / jnp.sqrt(d_model)
    return {
        "wc": jax.random.normal(ks[0], (d_model, d_model), jnp.float32) * s,
        "bc": jax.random.normal(ks[1], (1, d_model), jnp.float32) * s,
        "wa": jax.random.normal(ks[2], (d_model, d_model), jnp.float32) * s,
        "ba": jax.random.normal(ks[3], (1, d_model), jnp.float32) * s,
        "wv": jax.random.normal(ks[4], (d_model, vocab_size), jnp.float32) * s,
        "bv": jax.random.normal(ks[5], (1, vocab_size), jnp.float32) * s,
        "wcl": jax.random.normal(ks[6], (d_model, num_classes), jnp.float32) * s,
        "bcl": jax.random.normal(ks[7], (1, num_classes), jnp.float32) * s,
    }


def output_processing_forward(params, hidden_states, context_states=None, *,
                              tq=None, tv=None, tc=None):
    # Pre-cast all weight matrices to bf16 once in the wrapper: halves weight DMA /
    # VMEM footprint and removes per-grid-step in-kernel casts.
    wc = params["wc"].astype(jnp.bfloat16)
    wa = params["wa"].astype(jnp.bfloat16)
    wv = params["wv"].astype(jnp.bfloat16)
    wcl = params["wcl"].astype(jnp.bfloat16)

    outputs = {}
    if context_states is not None:
        cf = context_projection(context_states, wc, params["bc"], tc=tc)
        attn, combined = attention_combine(hidden_states, cf, wa, params["ba"], tq=tq)
        outputs["attention_weights"] = attn
    else:
        combined = hidden_states.astype(jnp.bfloat16)
    # Dropout(p=0.1) is identity at inference time.
    logits, lse = vocab_logits_lse(combined, wv, params["bv"], tq=tq, tv=tv)
    outputs["vocab_logits"] = logits
    outputs["vocab_probs"] = vocab_probs(logits, lse, tq=tq, tv=tv)
    clog, cprob = pooled_class_head(hidden_states, wcl, params["bcl"], tq=tq)
    outputs["class_logits"] = clog[:, 0, :]
    outputs["class_probs"] = cprob[:, 0, :]
    return outputs


# ---------------------------------------------------------------------------
# Reference (pure JAX, same bf16-input / f32-accumulate matmul policy).
# ---------------------------------------------------------------------------
def _reference_forward(params, hidden, context):
    bf16, f32 = jnp.bfloat16, jnp.float32
    outputs = {}
    if context is not None:
        cf = jnp.einsum("bld,de->ble", context.astype(bf16), params["wc"].astype(bf16),
                        preferred_element_type=f32) + params["bc"]
        af = jnp.einsum("bld,de->ble", hidden.astype(bf16), params["wa"].astype(bf16),
                        preferred_element_type=f32) + params["ba"]
        scores = jnp.einsum("bqd,bkd->bqk", af.astype(bf16), cf.astype(bf16),
                            preferred_element_type=f32)
        attn = jax.nn.softmax(scores, axis=-1)
        att = jnp.einsum("bqk,bkd->bqd", attn.astype(bf16), cf.astype(bf16),
                         preferred_element_type=f32)
        combined = hidden + att
        outputs["attention_weights"] = attn
    else:
        combined = hidden
    logits = jnp.einsum("bqd,dv->bqv", combined.astype(bf16), params["wv"].astype(bf16),
                        preferred_element_type=f32) + params["bv"]
    outputs["vocab_logits"] = logits
    outputs["vocab_probs"] = jax.nn.softmax(logits, axis=-1)
    pooled = hidden.mean(axis=1)
    clogits = jnp.einsum("bd,dc->bc", pooled.astype(bf16), params["wcl"].astype(bf16),
                         preferred_element_type=f32) + params["bcl"]
    outputs["class_logits"] = clogits
    outputs["class_probs"] = jax.nn.softmax(clogits, axis=-1)
    return outputs


if __name__ == "__main__":
    # Small shapes chosen so the tiled paths are exercised (num_q = 2, num_v = 4)
    # with bf16-friendly (16, 128) tiles.
    B, Ls, Lc, D, V, C = 2, 32, 16, 128, 512, 8
    TQ, TV, TC = 16, 128, 16

    key = jax.random.PRNGKey(0)
    k1, k2, k3 = jax.random.split(key, 3)
    params = init_params(k1, D, V, C)
    hidden = jax.random.normal(k2, (B, Ls, D), jnp.float32)
    context = jax.random.normal(k3, (B, Lc, D), jnp.float32)

    outs = output_processing_forward(params, hidden, context, tq=TQ, tv=TV, tc=TC)
    jax.block_until_ready(outs)

    ref = _reference_forward(params, hidden, context)
    for name in ["attention_weights", "vocab_logits", "vocab_probs",
                 "class_logits", "class_probs"]:
        assert jnp.allclose(outs[name], ref[name], atol=1e-2, rtol=1e-2), name

    # context_states=None path
    outs_nc = output_processing_forward(params, hidden, None, tq=TQ, tv=TV)
    jax.block_until_ready(outs_nc)
    ref_nc = _reference_forward(params, hidden, None)
    for name in ["vocab_logits", "vocab_probs", "class_logits", "class_probs"]:
        assert jnp.allclose(outs_nc[name], ref_nc[name], atol=1e-2, rtol=1e-2), name

    print("KERNEL_OK")
</pallas_src>

<mosaic_0001>
module attributes {stable_mosaic.version = 11 : i64} {
  func.func @_ctx_proj_kernel(%arg0: i32, %arg1: i32, %arg2: memref<1x16x128xf32, #tpu.memory_space<vmem>>, %arg3: memref<128x128xbf16, #tpu.memory_space<vmem>>, %arg4: memref<1x128xf32, #tpu.memory_space<vmem>>, %arg5: memref<1x16x128xbf16, #tpu.memory_space<vmem>>) attributes {dimension_semantics = [#tpu.dimension_semantics<parallel>, #tpu.dimension_semantics<parallel>], iteration_bounds = array<i64: 2, 1>, scalar_prefetch = 0 : i64, scratch_operands = 0 : i64, tpu.core_type = #tpu.core_type<tc>, window_params = [{transform_indices = @transform_0, window_bounds = array<i64: 1, 16, 128>}, {pipeline_mode = #tpu.pipeline_mode<synchronous>, transform_indices = @transform_1, window_bounds = array<i64: 128, 128>}, {pipeline_mode = #tpu.pipeline_mode<synchronous>, transform_indices = @transform_2, window_bounds = array<i64: 1, 128>}, {transform_indices = @transform_3, window_bounds = array<i64: 1, 16, 128>}]} {
    %c0 = arith.constant 0 : index
    %c0_0 = arith.constant 0 : index
    %c0_1 = arith.constant 0 : index
    %0 = vector.load %arg2[%c0, %c0_0, %c0_1] : memref<1x16x128xf32, #tpu.memory_space<vmem>>, vector<1x16x128xf32>
    %1 = vector.shape_cast %0 : vector<1x16x128xf32> to vector<16x128xf32>
    %2 = arith.truncf %1 : vector<16x128xf32> to vector<16x128xbf16>
    %c0_2 = arith.constant 0 : index
    %c0_3 = arith.constant 0 : index
    %3 = vector.load %arg3[%c0_2, %c0_3] : memref<128x128xbf16, #tpu.memory_space<vmem>>, vector<128x128xbf16>
    %cst = arith.constant dense<0.000000e+00> : vector<16x128xf32>
    %4 = tpu.matmul %2, %3, %cst {dimension_numbers = #tpu.dot_dimension_numbers<[1], [0], [0], [1], [0, 0, 1, 1], [], []>} : vector<16x128xbf16>, vector<128x128xbf16>, vector<16x128xf32> -> vector<16x128xf32>
    %c0_4 = arith.constant 0 : index
    %c0_5 = arith.constant 0 : index
    %5 = vector.load %arg4[%c0_4, %c0_5] : memref<1x128xf32, #tpu.memory_space<vmem>>, vector<1x128xf32>
    %6 = vector.broadcast %5 : vector<1x128xf32> to vector<16x128xf32>
    %7 = arith.addf %4, %6 : vector<16x128xf32>
    %8 = arith.truncf %7 : vector<16x128xf32> to vector<16x128xbf16>
    %c0_6 = arith.constant 0 : index
    %c0_7 = arith.constant 0 : index
    %c0_8 = arith.constant 0 : index
    %9 = vector.load %arg5[%c0_6, %c0_7, %c0_8] : memref<1x16x128xbf16, #tpu.memory_space<vmem>>, vector<1x16x128xbf16>
    %10 = vector.shape_cast %9 : vector<1x16x128xbf16> to vector<16x128xbf16>
    %11 = vector.shape_cast %8 : vector<16x128xbf16> to vector<1x16x128xbf16>
    tpu.vector_store %arg5[%c0_6, %c0_7, %c0_8], %11 {strides = array<i32>} : memref<1x16x128xbf16, #tpu.memory_space<vmem>>, vector<1x16x128xbf16>,
    return
  }
  func.func @transform_0(%arg0: i32, %arg1: i32) -> (i32, i32, i32) {
    %c0_i32 = arith.constant 0 : i32
    %c0_i32_0 = arith.constant 0 : i32
    return %arg0, %arg1, %c0_i32 : i32, i32, i32
  }
  func.func @transform_1(%arg0: i32, %arg1: i32) -> (i32, i32) {
    %c0_i32 = arith.constant 0 : i32
    %c0_i32_0 = arith.constant 0 : i32
    %c0_i32_1 = arith.constant 0 : i32
    return %c0_i32, %c0_i32_0 : i32, i32
  }
  func.func @transform_2(%arg0: i32, %arg1: i32) -> (i32, i32) {
    %c0_i32 = arith.constant 0 : i32
    %c0_i32_0 = arith.constant 0 : i32
    %c0_i32_1 = arith.constant 0 : i32
    return %c0_i32, %c0_i32_0 : i32, i32
  }
  func.func @transform_3(%arg0: i32, %arg1: i32) -> (i32, i32, i32) {
    %c0_i32 = arith.constant 0 : i32
    %c0_i32_0 = arith.constant 0 : i32
    return %arg0, %arg1, %c0_i32 : i32, i32, i32
  }
}

</mosaic_0001>

<llo_original>
// kernel: tpu_custom_call.1
$region0: #{tpu_custom_call.1}
  #allocation0 [shape = 'u32[]', space=smem, size = 0x4, offset = 0x4, fixed_abs, tag = 'smem constant byte address 0x4 - core index']
  #allocation1 [shape = 'u32[144,128]{1,0:T(1,128)}', space=vmem, size = 0x12000, scoped, tag = 'internal scratch']
  %s0 = inlined_call_operand.hbm [shape: f32[2,16,128], index: 0, kind: input, shape index: {}]
  %s1 = inlined_call_operand.hbm [shape: bf16[128,128], index: 1, kind: input, shape index: {}]
  %s2 = inlined_call_operand.vmem [shape: f32[1,128], index: 2, kind: input, shape index: {}]
  %s3 = inlined_call_operand.hbm [shape: bf16[2,16,128], index: 3, kind: output, shape index: {}]
  %s4 = sld [smem:[#allocation0]]
  $region53: #{tpu_custom_call.1} parent=0
    _
  %s6 = ssub.s32 1, %s4
  %s7 = scalar_select 0, %s6, %s4
  $region1: #{tpu_custom_call.1} parent=0
    #allocation2 [shape = 'u8[16384]{0}', space=vmem, size = 0x4000, scoped, tag = 'input window, operand 0']
    #allocation3 [shape = 's32[2]{0}', space=sflag, size = 0x8, scoped, tag = 'scoped memory for tpu_custom_call.1']
    #allocation4 [shape = 's32[2]{0}', space=sflag, size = 0x8, scoped, tag = 'scoped memory for tpu_custom_call.1']
    #allocation5 [shape = 'u8[32768]{0}', space=vmem, size = 0x8000, scoped, tag = 'input window, operand 1, single buffered']
    #allocation6 [shape = 's32[1]{0}', space=sflag, size = 0x4, scoped, tag = 'scoped memory for tpu_custom_call.1']
    #allocation7 [shape = 'u8[8192]{0}', space=vmem, size = 0x2000, scoped, tag = 'output window, operand 0']
    %8 = vsyncpa [#allocation3], 0
    %s9 = scalar_lea.sflag [#allocation3], 1
    %10 = vsyncpa %s9, 0
    %11 = vsyncpa [#allocation6], 0
    %12 = vsyncpa [#allocation4], 0
    %s13 = scalar_lea.sflag [#allocation4], 1
    %14 = vsyncpa %s13, 0
    loop: start=0, step=1, limit=4
    $region2: #{tpu_custom_call.1} parent=1 // loop_pre_header
      _
    $region3: #{tpu_custom_call.1} parent=1 // loop_header
      %s16 = sphi 0, %s20
      %p17 = scmp.ge.s32.totalorder %s16, 4
      %s23 = sphi 0, %s35
      %s24 = sphi 0, %s31
      %s25 = sphi 0, %s23
      %s26 = sphi 0, %s24
      %s27 = sphi 0, %s25
      %s28 = sphi 0, %s26
      %s40 = sphi 0, %s42
      %s43 = sphi 0, %s40
      %s44 = sphi 0, %s43
      %s60 = sphi 0, %s44
      %s64 = sphi 0, %s64
      %s66 = sphi 0, %s64
      %s67 = sphi 0, %s66
      %s81 = sphi 0, %s67
      %s85 = sphi 0, %s85
      %s87 = sphi 0, %s85
      %s88 = sphi 0, %s87
      %s102 = sphi 0, %s88
      %s110 = sphi 0, %s112
      %s113 = sphi 0, %s110
      %s114 = sphi 0, %s113
      %s130 = sphi 0, %s114
    $region4: #{tpu_custom_call.1} parent=1 // loop_header_branch
      %19 = sbr.rel (%p17) target = $region8
    $region5: #{tpu_custom_call.1} parent=1 // loop_body
      %s21 = ssub.s32 %s16, 1
      %s22 = ssub.s32 %s16, 2
      %s29 = sadd.s32 1, %s24
      %p30 = scmp.ge.s32.totalorder %s29, 1
      %s31 = scalar_select %p30, 0, %s29
      %s32 = sadd.s32 1, %s23
      %s33 = scalar_select %p30, %s32, %s23
      %p34 = scmp.ge.s32.totalorder %s33, 2
      %s35 = scalar_select %p34, 0, %s33
      %s36 = ssub.s32 %s23, %s35
      %s37 = ssub.s32 %s24, %s31
      %s38 = sor.u32 %s36, %s37
      %p39 = scmp.eq.s32.totalorder %s38, 0
      %s41 = sadd.s32 %s40, 1
      %s42 = scalar_select %p39, %s40, %s41
      %p45 = pneg %p39
      %p46 = scmp.eq.s32.totalorder %s16, 1
      %p47 = por %p45, %p46
      %p48 = scmp.ne.s32.totalorder %s40, %s43
      %p49 = scmp.eq.s32.totalorder %s16, 0
      %p50 = por %p48, %p49
      %p51 = scmp.ne.s32.totalorder %s40, %s43
      %p52 = scmp.eq.s32.totalorder %s21, 1
      %p53 = por %p51, %p52
      %p54 = scmp.ne.s32.totalorder %s43, %s44
      %p55 = scmp.eq.s32.totalorder %s21, 0
      %p56 = por %p54, %p55
      %p57 = scmp.ne.s32.totalorder %s43, %s44
      %p58 = scmp.eq.s32.totalorder %s22, 1
      %p59 = por %p57, %p58
      %p61 = scmp.ne.s32.totalorder %s44, %s60
      %p62 = scmp.eq.s32.totalorder %s22, 0
      %p63 = por %p61, %p62
      %s65 = sadd.s32 %s64, 1
      %p68 = scmp.eq.s32.totalorder %s16, 1
      %p69 = scmp.ne.s32.totalorder %s64, %s66
      %p70 = scmp.eq.s32.totalorder %s16, 0
      %p71 = por %p69, %p70
      %p72 = scmp.ne.s32.totalorder %s64, %s66
      %p73 = scmp.eq.s32.totalorder %s21, 1
      %p74 = por %p72, %p73
      %p75 = scmp.ne.s32.totalorder %s66, %s67
      %p76 = scmp.eq.s32.totalorder %s21, 0
      %p77 = por %p75, %p76
      %p78 = scmp.ne.s32.totalorder %s66, %s67
      %p79 = scmp.eq.s32.totalorder %s22, 1
      %p80 = por %p78, %p79
      %p82 = scmp.ne.s32.totalorder %s67, %s81
      %p83 = scmp.eq.s32.totalorder %s22, 0
      %p84 = por %p82, %p83
      %s86 = sadd.s32 %s85, 1
      %p89 = scmp.eq.s32.totalorder %s16, 1
      %p90 = scmp.ne.s32.totalorder %s85, %s87
      %p91 = scmp.eq.s32.totalorder %s16, 0
      %p92 = por %p90, %p91
      %p93 = scmp.ne.s32.totalorder %s85, %s87
      %p94 = scmp.eq.s32.totalorder %s21, 1
      %p95 = por %p93, %p94
      %p96 = scmp.ne.s32.totalorder %s87, %s88
      %p97 = scmp.eq.s32.totalorder %s21, 0
      %p98 = por %p96, %p97
      %p99 = scmp.ne.s32.totalorder %s87, %s88
      %p100 = scmp.eq.s32.totalorder %s22, 1
      %p101 = por %p99, %p100
      %p103 = scmp.ne.s32.totalorder %s88, %s102
      %p104 = scmp.eq.s32.totalorder %s22, 0
      %p105 = por %p103, %p104
      %s106 = ssub.s32 %s23, %s35
      %s107 = ssub.s32 %s24, %s31
      %s108 = sor.u32 %s106, %s107
      %p109 = scmp.eq.s32.totalorder %s108, 0
      %s111 = sadd.s32 %s110, 1
      %s112 = scalar_select %p109, %s110, %s111
      %p115 = pneg %p109
      %p116 = scmp.eq.s32.totalorder %s16, 1
      %p117 = por %p115, %p116
      %p118 = scmp.ne.s32.totalorder %s110, %s113
      %p119 = scmp.eq.s32.totalorder %s16, 0
      %p120 = por %p118, %p119
      %p121 = scmp.ne.s32.totalorder %s110, %s113
      %p122 = scmp.eq.s32.totalorder %s21, 1
      %p123 = por %p121, %p122
      %p124 = scmp.ne.s32.totalorder %s113, %s114
      %p125 = scmp.eq.s32.totalorder %s21, 0
      %p126 = por %p124, %p125
      %p127 = scmp.ne.s32.totalorder %s113, %s114
      %p128 = scmp.eq.s32.totalorder %s22, 1
      %p129 = por %p127, %p128
      %p131 = scmp.ne.s32.totalorder %s114, %s130
      %p132 = scmp.eq.s32.totalorder %s22, 0
      %p133 = por %p131, %p132
      %p134 = scmp.le.s32.totalorder 1, %s16
      %p135 = scmp.lt.s32.totalorder %s16, 3
      %p136 = pnand %p134, %p135
      %p137 = pneg %p136
      // Predicated region
      $region9: #{tpu_custom_call.1} parent=5 // pred_check
        _
      $region10: #{tpu_custom_call.1} parent=5 // pred_check_branch
        %139 = sbr.rel (%p136) target = $region12
      $region11: #{tpu_custom_call.1} parent=5 // pred_region
        %s140 = ssub.s32 %s16, 1
        // Predicated region
        $region13: #{tpu_custom_call.1} parent=11 // pred_check
          %p141 = pneg %p77
        $region14: #{tpu_custom_call.1} parent=11 // pred_check_branch
          %143 = sbr.rel (%p141) target = $region16
        $region15: #{tpu_custom_call.1} parent=11 // pred_region
          %s145 = ssub.s32 1024, 1024
          %146 = vsyncadd [#allocation6], %s145
          %s147 = sshll.u32 [#allocation5], 4
          %s148 = int_to_ptr.vmem [resolvable:$true] %s147
          %153 = dma.hbm_to_vmem [thread:$0]  %s1, 1024, %s148, [#allocation6], 64, 64, 4
        $region16: #{tpu_custom_call.1} parent=11 // pred_fallthru
          _
        // Predicated region
        $region17: #{tpu_custom_call.1} parent=11 // pred_check
          %p154 = pneg %p98
        $region18: #{tpu_custom_call.1} parent=11 // pred_check_branch
          %156 = sbr.rel (%p154) target = $region20
        $region19: #{tpu_custom_call.1} parent=11 // pred_region
          _
        $region20: #{tpu_custom_call.1} parent=11 // pred_fallthru
          _
      $region12: #{tpu_custom_call.1} parent=5 // pred_fallthru
        _
      %p157 = scmp.lt.s32.totalorder %s16, 2
      // Predicated region
      $region21: #{tpu_custom_call.1} parent=5 // pred_check
        %p158 = pneg %p157
      $region22: #{tpu_custom_call.1} parent=5 // pred_check_branch
        %160 = sbr.rel (%p158) target = $region24
      $region23: #{tpu_custom_call.1} parent=5 // pred_region
        // Predicated region
        $region25: #{tpu_custom_call.1} parent=23 // pred_check
          %p161 = pneg %p50
        $region26: #{tpu_custom_call.1} parent=23 // pred_check_branch
          %163 = sbr.rel (%p161) target = $region28
        $region27: #{tpu_custom_call.1} parent=23 // pred_region
          %s164 = sand.u32 %s40, 1
          %s165 = scalar_lea.sflag [#allocation3], %s164
          %s166 = sand.u32 %s40, 1
          %s167 = smul.addr %s166, 16
          %s168 = scalar_lea.vmem [#allocation2], %s167
          %s169 = smul.u32 2, %s24
          %s171 = ssub.s32 256, 256
          %172 = vsyncadd %s165, %s171
          %s173 = smul.addr %s23, 2
          %s174 = sadd.s32 %s169, %s173
          %s175 = smul.addr %s174, 128
          %s176 = scalar_lea.hbm %s0, %s175
          %s177 = sshll.u32 %s168, 4
          %s178 = int_to_ptr.vmem [resolvable:$true] %s177
          %183 = dma.hbm_to_vmem [thread:$0]  %s176, 256, %s178, %s165, 128, 128, 8
        $region28: #{tpu_custom_call.1} parent=23 // pred_fallthru
          _
      $region24: #{tpu_custom_call.1} parent=5 // pred_fallthru
        _
      %p184 = scmp.le.s32.totalorder 1, %s16
      %p185 = scmp.lt.s32.totalorder %s16, 3
      %p186 = pnand %p184, %p185
      %p187 = pneg %p186
      // Predicated region
      $region29: #{tpu_custom_call.1} parent=5 // pred_check
        _
      $region30: #{tpu_custom_call.1} parent=5 // pred_check_branch
        %189 = sbr.rel (%p186) target = $region32
      $region31: #{tpu_custom_call.1} parent=5 // pred_region
        %s190 = ssub.s32 %s16, 1
        %s191 = sand.u32 %s43, 1
        %s192 = scalar_lea.sflag [#allocation3], %s191
        %s193 = sand.u32 %s43, 1
        %s194 = smul.addr %s193, 16
        %s195 = scalar_lea.vmem [#allocation2], %s194
        // Predicated region
        $region33: #{tpu_custom_call.1} parent=31 // pred_check
          %p196 = pneg %p56
        $region34: #{tpu_custom_call.1} parent=31 // pred_check_branch
          %198 = sbr.rel (%p196) target = $region36
        $region35: #{tpu_custom_call.1} parent=31 // pred_region
          %199 = dma.done %s192, 256
        $region36: #{tpu_custom_call.1} parent=31 // pred_fallthru
          _
        // Predicated region
        $region37: #{tpu_custom_call.1} parent=31 // pred_check
          %p200 = pneg %p77
        $region38: #{tpu_custom_call.1} parent=31 // pred_check_branch
          %202 = sbr.rel (%p200) target = $region40
        $region39: #{tpu_custom_call.1} parent=31 // pred_region
          %203 = dma.done [#allocation6], 1024
        $region40: #{tpu_custom_call.1} parent=31 // pred_fallthru
          _
        %s204 = sand.u32 %s43, 1
        %s205 = scalar_lea.sflag [#allocation3], %s204
        %s206 = sand.u32 %s43, 1
        %s207 = smul.addr %s206, 16
        %s208 = scalar_lea.vmem [#allocation2], %s207
        %p209 = pneg %p56
        %p210 = pneg %p53
        %p211 = pneg %p77
        %p212 = pneg %p74
        %p213 = pneg %p98
        %p214 = pneg %p95
        %p215 = pneg %p126
        %p216 = pneg %p123
        %s217 = sand.u32 %s113, 1
        %s218 = scalar_lea.sflag [#allocation4], %s217
        %s219 = sand.u32 %s113, 1
        %s220 = smul.addr %s219, 8
        %s221 = scalar_lea.vmem [#allocation7], %s220
        %s222 = smul.u32 2, %s26
        %s223 = smul.u32 2, %s26
        %v225 = vld [vmem:[%s195] sm:$0xff]
        %v226 = vld [vmem:[%s195 + $0x8] sm:$0xff]
        %v227 = vpack.c.bf16 %v226, %v225
        %v228 = vld [vmem:[#allocation5] sm:$0xf]
        %v229 = vld [vmem:[#allocation5 + $0x4] sm:$0xf]
        %v230 = vld [vmem:[#allocation5 + $0x8] sm:$0xf]
        %v231 = vld [vmem:[#allocation5 + $0xc] sm:$0xf]
        %v232 = vld [vmem:[#allocation5 + $0x10] sm:$0xf]
        %v233 = vld [vmem:[#allocation5 + $0x14] sm:$0xf]
        %v234 = vld [vmem:[#allocation5 + $0x18] sm:$0xf]
        %v235 = vld [vmem:[#allocation5 + $0x1c] sm:$0xf]
        %v236 = vld [vmem:[#allocation5 + $0x20] sm:$0xf]
        %v237 = vld [vmem:[#allocation5 + $0x24] sm:$0xf]
        %v238 = vld [vmem:[#allocation5 + $0x28] sm:$0xf]
        %v239 = vld [vmem:[#allocation5 + $0x2c] sm:$0xf]
        %v240 = vld [vmem:[#allocation5 + $0x30] sm:$0xf]
        %v241 = vld [vmem:[#allocation5 + $0x34] sm:$0xf]
        %v242 = vld [vmem:[#allocation5 + $0x38] sm:$0xf]
        %v243 = vld [vmem:[#allocation5 + $0x3c] sm:$0xf]
        %v244 = vld [vmem:[%s2] sm:$0x1]
        %v246 = vlaneseq
        %v247 = vshrl.u32 %v246, 7
        %v248 = vsub.s32 0, %v247
        %v249 = vrot.slane %v244, %v248
        %v267 = vunpack.c.l.b16 %v228
        %v268 = vunpack.c.l.b16 %v229
        %v269 = vunpack.c.l.b16 %v230
        %v270 = vunpack.c.l.b16 %v231
        %v271 = vunpack.c.l.b16 %v232
        %v272 = vunpack.c.l.b16 %v233
        %v273 = vunpack.c.l.b16 %v234
        %v274 = vunpack.c.l.b16 %v235
        %v275 = vunpack.c.l.b16 %v236
        %v276 = vunpack.c.l.b16 %v237
        %v277 = vunpack.c.l.b16 %v238
        %v278 = vunpack.c.l.b16 %v239
        %v279 = vunpack.c.l.b16 %v240
        %v280 = vunpack.c.l.b16 %v241
        %v281 = vunpack.c.l.b16 %v242
        %v282 = vunpack.c.l.b16 %v243
        %v283 = vpack.c.b16 %v268, %v267
        %v284 = vpack.c.b16 %v270, %v269
        %v285 = vpack.c.b16 %v272, %v271
        %v286 = vpack.c.b16 %v274, %v273
        %v287 = vpack.c.b16 %v276, %v275
        %v288 = vpack.c.b16 %v278, %v277
        %v289 = vpack.c.b16 %v280, %v279
        %v290 = vpack.c.b16 %v282, %v281
        %299 = vmatprep.subr.bf16.mxu0 0
        %300 = vmatpush1.bf16.msra.mxu0 %v290
        %301 = vmatprep.subr.bf16.mxu0 0
        %302 = vmatpush1.bf16.msra.mxu0 %v289
        %303 = vmatprep.subr.bf16.mxu0 0
        %304 = vmatpush1.bf16.msra.mxu0 %v288
        %305 = vmatprep.subr.bf16.mxu0 0
        %306 = vmatpush1.bf16.msra.mxu0 %v287
        %307 = vmatprep.subr.bf16.mxu0 0
        %308 = vmatpush1.bf16.msra.mxu0 %v286
        %309 = vmatprep.subr.bf16.mxu0 0
        %310 = vmatpush1.bf16.msra.mxu0 %v285
        %311 = vmatprep.subr.bf16.mxu0 0
        %312 = vmatpush1.bf16.msra.mxu0 %v284
        %313 = vmatprep.subr.bf16.mxu0 0
        %314 = vmatpush1.bf16.msra.mxu0 %v283
        %315 = vmatprep.subr.bf16.mxu0 0
        %316 = vmatpush2.bf16.msra.mxu0 0
        %317 = vmatprep.subr.bf16.mxu0 0
        %318 = vmatpush2.bf16.msra.mxu0 0
        %319 = vmatprep.subr.bf16.mxu0 0
        %320 = vmatpush2.bf16.msra.mxu0 0
        %321 = vmatprep.subr.bf16.mxu0 0
        %322 = vmatpush2.bf16.msra.mxu0 0
        %323 = vmatprep.subr.bf16.mxu0 0
        %324 = vmatpush2.bf16.msra.mxu0 0
        %325 = vmatprep.subr.bf16.mxu0 0
        %326 = vmatpush2.bf16.msra.mxu0 0
        %327 = vmatprep.subr.bf16.mxu0 0
        %328 = vmatpush2.bf16.msra.mxu0 0
        %329 = vmatprep.subr.bf16.mxu0 0
        %330 = vmatpush2.bf16.msra.mxu0 0
        %331 = vmatprep.mubr.bf16.mxu0 0
        %332 = vmatmul.mubr.bf16.gmra.mxu0 %v227
        %v333 = vpop.f32.mrf.mxu0
        %v334 = vadd.f32 %v249, %v333
        %v335 = vpop.f32.mrf.mxu0
        %v336 = vpop.f32.mrf.mxu0
        %v337 = vadd.f32 %v249, %v336
        %v338 = vpop.f32.mrf.mxu0
        %339 = vdwg.mxu0
        %v340 = vpack.c.bf16 %v337, %v334
        %v342 = vunpack.c.l.b16 %v340
        %v343 = vunpack.c.h.b16 %v340
        %v344 = vpack.c.b16 %v342, %v342
        %v345 = vpack.c.b16 %v343, %v343
        %348 = vst [vmem:[%s221] sm:$0xf] %v344
        %349 = vst [vmem:[%s221 + $0x4] sm:$0xf] %v345
        %s350 = sand.u32 %s113, 1
        %s351 = scalar_lea.sflag [#allocation4], %s350
        %s352 = sand.u32 %s113, 1
        %s353 = smul.addr %s352, 8
        %s354 = scalar_lea.vmem [#allocation7], %s353
        // Predicated region
        $region41: #{tpu_custom_call.1} parent=31 // pred_check
          %p355 = pneg %p123
        $region42: #{tpu_custom_call.1} parent=31 // pred_check_branch
          %357 = sbr.rel (%p355) target = $region44
        $region43: #{tpu_custom_call.1} parent=31 // pred_region
          %s358 = smul.u32 2, %s26
          %s360 = ssub.s32 128, 128
          %361 = vsyncadd %s351, %s360
          %s362 = smul.addr %s25, 2
          %s363 = sadd.s32 %s358, %s362
          %s364 = smul.addr %s363, 64
          %s365 = scalar_lea.hbm %s3, %s364
          %s366 = sshll.u32 %s354, 4
          %s367 = int_to_ptr.vmem [resolvable:$true] %s366
          %372 = dma.vmem_to_hbm [thread:$0]  %s367, 128, %s365, %s351, 64, 64, 4
        $region44: #{tpu_custom_call.1} parent=31 // pred_fallthru
          _
      $region32: #{tpu_custom_call.1} parent=5 // pred_fallthru
        _
      %p373 = scmp.le.s32.totalorder 2, %s16
      // Predicated region
      $region45: #{tpu_custom_call.1} parent=5 // pred_check
        %p374 = pneg %p373
      $region46: #{tpu_custom_call.1} parent=5 // pred_check_branch
        %376 = sbr.rel (%p374) target = $region48
      $region47: #{tpu_custom_call.1} parent=5 // pred_region
        %s377 = ssub.s32 %s16, 2
        // Predicated region
        $region49: #{tpu_custom_call.1} parent=47 // pred_check
          %p378 = pneg %p129
        $region50: #{tpu_custom_call.1} parent=47 // pred_check_branch
          %380 = sbr.rel (%p378) target = $region52
        $region51: #{tpu_custom_call.1} parent=47 // pred_region
          %s381 = sand.u32 %s114, 1
          %s382 = scalar_lea.sflag [#allocation4], %s381
          %s383 = sand.u32 %s114, 1
          %s384 = smul.addr %s383, 8
          %s385 = scalar_lea.vmem [#allocation7], %s384
          %386 = dma.done %s382, 128
        $region52: #{tpu_custom_call.1} parent=47 // pred_fallthru
          _
      $region48: #{tpu_custom_call.1} parent=5 // pred_fallthru
        _
    $region6: #{tpu_custom_call.1} parent=1 // loop_footer
      %s20 = sadd.s32 1, %s16
    $region7: #{tpu_custom_call.1} parent=1 // loop_footer_branch
      %15 = sbr.rel target = $region3
    $region8: #{tpu_custom_call.1} parent=1 // loop_exit
      _
    %387 = vsyncpa [#allocation3], 1
    %s388 = scalar_lea.sflag [#allocation3], 1
    %389 = vsyncpa %s388, 1
    %390 = vsyncpa [#allocation6], 1
    %391 = vsyncpa [#allocation4], 1
    %s392 = scalar_lea.sflag [#allocation4], 1
    %393 = vsyncpa %s392, 1

</llo_original>
